<compile_context>
chip_gen: v6e
topology: v6e:2x2x1
jax: 0.10.0
libtpu: 0.0.40
codegen_flags: <defaults>
</compile_context>

<pallas_src>
import functools

import jax
import jax.numpy as jnp
from jax.experimental import pallas as pl
from jax.experimental.pallas import tpu as pltpu


def _round_up(x, n):
    return ((x + n - 1) // n) * n


def _mish_f32(y):
    # mish(y) = y * tanh(softplus(y)) = y * (t^2 + 2t) / (t^2 + 2t + 2), t = e^y.
    # Clamp + select keeps large y exact (tanh(softplus(y)) -> 1) with no NaNs.
    t = jnp.exp(jnp.minimum(y, 20.0))
    num = t * (t + 2.0)
    return jnp.where(y > 20.0, y, y * (num / (num + 2.0)))


def _ffn_kernel(x_ref, w_ref, b_ref, o_ref, *, num_layers):
    # x_ref: (TM, Hp), w_ref: (L, Hp, Hp), b_ref: (L, 1, Hp), o_ref: (TM, Hp)
    x = x_ref[...]                                  # keep native dtype for MXU
    for layer in range(num_layers):                 # static, unrolled over layers
        y = jnp.dot(x, w_ref[layer], preferred_element_type=jnp.float32)
        y = y + b_ref[layer].astype(jnp.float32)    # (TM, Hp) + (1, Hp)
        x = _mish_f32(y).astype(x_ref.dtype)
    # TODO(synk): training-mode dropout (pltpu.prng_seed + stateful_bernoulli)
    #             is not implemented; eval-mode dropout is the identity.
    o_ref[...] = x.astype(o_ref.dtype)


def _call(x2d, w3d, b3d, *, tm, num_layers, h_pad, single_buffer_params,
          vmem_limit, cost):
    m_padded = x2d.shape[0]
    pipeline_mode = pl.Buffered(1) if single_buffer_params else None
    w_spec = pl.BlockSpec((num_layers, h_pad, h_pad), lambda i: (0, 0, 0),
                          pipeline_mode=pipeline_mode)
    b_spec = pl.BlockSpec((num_layers, 1, h_pad), lambda i: (0, 0, 0),
                          pipeline_mode=pipeline_mode)
    kernel = functools.partial(_ffn_kernel, num_layers=num_layers)
    return pl.pallas_call(
        kernel,
        out_shape=jax.ShapeDtypeStruct((m_padded, h_pad), x2d.dtype),
        grid_spec=pltpu.PrefetchScalarGridSpec(
            num_scalar_prefetch=0,
            grid=(m_padded // tm,),
            in_specs=[
                pl.BlockSpec((tm, h_pad), lambda i: (i, 0)),
                w_spec,
                b_spec,
            ],
            out_specs=pl.BlockSpec((tm, h_pad), lambda i: (i, 0)),
        ),
        compiler_params=pltpu.CompilerParams(
            dimension_semantics=("parallel",),
            vmem_limit_bytes=vmem_limit,
        ),
        cost_estimate=cost,
    )(x2d, w3d, b3d)


def position_wise_feed_forward(x, weights, biases, *, tile_m=512):
    """x: (batch, seq, H). weights: (L, H_in, H_out). biases: (L, H)."""
    batch, seq, hidden = x.shape
    num_layers = weights.shape[0]
    if num_layers == 0:
        return x

    m = batch * seq
    x2d = x.reshape(m, hidden)

    # Lane-dense hidden: zero-pad H up to a multiple of 128.
    h_pad = _round_up(max(hidden, 128), 128)
    if h_pad != hidden:
        dh = h_pad - hidden
        x2d = jnp.pad(x2d, ((0, 0), (0, dh)))
        weights = jnp.pad(weights, ((0, 0), (0, dh), (0, dh)))
        biases = jnp.pad(biases, ((0, 0), (0, dh)))

    # Large row tiles (multiple of 8); pad M up to a tile multiple.
    tm = _round_up(min(tile_m, _round_up(m, 8)), 8)
    m_padded = _round_up(m, tm)
    if m_padded != m:
        x2d = jnp.pad(x2d, ((0, m_padded - m), (0, 0)))

    b3d = biases.reshape(num_layers, 1, h_pad)

    # VMEM budget: weights (worst case double-buffered) + biases + in/out
    # double-buffered row tiles + headroom, clamped to a safe range.
    # TODO(synk): on v7x (64 MiB VMEM) with very large L*H*H, stream one
    #             (H,H) layer slab at a time via memory_space=pl.ANY +
    #             pltpu.make_async_copy instead of keeping all layers resident.
    x_item = x2d.dtype.itemsize
    w_bytes = weights.size * weights.dtype.itemsize
    b_bytes = b3d.size * b3d.dtype.itemsize
    io_bytes = 2 * 2 * tm * h_pad * x_item
    needed = 2 * w_bytes + 2 * b_bytes + io_bytes + (8 << 20)
    vmem_limit = int(min(max(needed, 32 << 20), 100 << 20))

    cost = pl.CostEstimate(
        flops=int(2 * m_padded * h_pad * h_pad * num_layers),
        transcendentals=int(m_padded * h_pad * num_layers),
        bytes_accessed=int(w_bytes + b_bytes + 2 * m_padded * h_pad * x_item),
    )

    common = dict(tm=tm, num_layers=num_layers, h_pad=h_pad,
                  vmem_limit=vmem_limit, cost=cost)
    try:
        out2d = _call(x2d, weights, b3d, single_buffer_params=True, **common)
    except Exception:
        # pipeline_mode=pl.Buffered(1) not supported on this JAX build; fall
        # back to default double-buffering of the (constant) weight block.
        out2d = _call(x2d, weights, b3d, single_buffer_params=False, **common)

    out2d = out2d[:m, :hidden]
    return out2d.reshape(batch, seq, hidden)


def _reference(x, weights, biases):
    """Pure-JAX reference (exact tanh(softplus) mish) for correctness check."""
    def mish(y):
        return y * jnp.tanh(jax.nn.softplus(y))
    out = x.astype(jnp.float32)
    for l in range(weights.shape[0]):
        out = mish(out @ weights[l].astype(jnp.float32) + biases[l])
    return out.astype(x.dtype)


if __name__ == "__main__":
    batch, seq, hidden = 2, 8, 32
    num_layers = 3

    key = jax.random.PRNGKey(0)
    kx, kw, kb = jax.random.split(key, 3)

    x = jax.random.normal(kx, (batch, seq, hidden), dtype=jnp.float32)
    # Deterministic parameter init, roughly matching nn.Linear's uniform scale.
    bound = 1.0 / (hidden ** 0.5)
    weights = jax.random.uniform(
        kw, (num_layers, hidden, hidden), jnp.float32, -bound, bound)
    biases = jax.random.uniform(
        kb, (num_layers, hidden), jnp.float32, -bound, bound)

    out = position_wise_feed_forward(x, weights, biases)
    out = jax.block_until_ready(out)

    ref = _reference(x, weights, biases)
    assert out.shape == x.shape
    assert jnp.allclose(out, ref, atol=1e-4, rtol=1e-4), "mismatch vs reference"

    print("KERNEL_OK")
</pallas_src>

<mosaic_0001>
module attributes {stable_mosaic.version = 11 : i64} {
  func.func @_ffn_kernel(%arg0: i32, %arg1: memref<16x128xf32, #tpu.memory_space<vmem>>, %arg2: memref<3x128x128xf32, #tpu.memory_space<vmem>>, %arg3: memref<3x1x128xf32, #tpu.memory_space<vmem>>, %arg4: memref<16x128xf32, #tpu.memory_space<vmem>>) attributes {dimension_semantics = [#tpu.dimension_semantics<parallel>], iteration_bounds = array<i64: 1>, scalar_prefetch = 0 : i64, scratch_operands = 0 : i64, tpu.core_type = #tpu.core_type<tc>, window_params = [{transform_indices = @transform_0, window_bounds = array<i64: 16, 128>}, {pipeline_mode = #tpu.pipeline_mode<synchronous>, transform_indices = @transform_1, window_bounds = array<i64: 3, 128, 128>}, {pipeline_mode = #tpu.pipeline_mode<synchronous>, transform_indices = @transform_2, window_bounds = array<i64: 3, 1, 128>}, {transform_indices = @transform_3, window_bounds = array<i64: 16, 128>}]} {
    %c0 = arith.constant 0 : index
    %c0_0 = arith.constant 0 : index
    %0 = vector.load %arg1[%c0, %c0_0] : memref<16x128xf32, #tpu.memory_space<vmem>>, vector<16x128xf32>
    %c0_1 = arith.constant 0 : index
    %c0_2 = arith.constant 0 : index
    %c0_3 = arith.constant 0 : index
    %1 = vector.load %arg2[%c0_1, %c0_2, %c0_3] : memref<3x128x128xf32, #tpu.memory_space<vmem>>, vector<1x128x128xf32>
    %2 = vector.shape_cast %1 : vector<1x128x128xf32> to vector<128x128xf32>
    %cst = arith.constant dense<0.000000e+00> : vector<16x128xf32>
    %3 = tpu.matmul %0, %2, %cst {dimension_numbers = #tpu.dot_dimension_numbers<[1], [0], [0], [1], [0, 0, 1, 1], [], []>} : vector<16x128xf32>, vector<128x128xf32>, vector<16x128xf32> -> vector<16x128xf32>
    %c0_4 = arith.constant 0 : index
    %c0_5 = arith.constant 0 : index
    %c0_6 = arith.constant 0 : index
    %4 = vector.load %arg3[%c0_4, %c0_5, %c0_6] : memref<3x1x128xf32, #tpu.memory_space<vmem>>, vector<1x1x128xf32>
    %5 = vector.shape_cast %4 : vector<1x1x128xf32> to vector<1x128xf32>
    %6 = vector.broadcast %5 : vector<1x128xf32> to vector<16x128xf32>
    %7 = arith.addf %3, %6 : vector<16x128xf32>
    %cst_7 = arith.constant 2.000000e+01 : f32
    %8 = vector.broadcast %cst_7 : f32 to vector<16x128xf32>
    %9 = arith.minimumf %7, %8 : vector<16x128xf32>
    %10 = math.exp %9 : vector<16x128xf32>
    %cst_8 = arith.constant 2.000000e+00 : f32
    %11 = vector.broadcast %cst_8 : f32 to vector<16x128xf32>
    %12 = arith.addf %10, %11 : vector<16x128xf32>
    %13 = arith.mulf %10, %12 : vector<16x128xf32>
    %cst_9 = arith.constant 2.000000e+01 : f32
    %14 = vector.broadcast %cst_9 : f32 to vector<16x128xf32>
    %15 = arith.cmpf ogt, %7, %14 : vector<16x128xf32>
    %cst_10 = arith.constant 2.000000e+00 : f32
    %16 = vector.broadcast %cst_10 : f32 to vector<16x128xf32>
    %17 = arith.addf %13, %16 : vector<16x128xf32>
    %18 = arith.divf %13, %17 : vector<16x128xf32>
    %19 = arith.mulf %7, %18 : vector<16x128xf32>
    %20 = arith.select %15, %7, %19 : vector<16x128xi1>, vector<16x128xf32>
    %c1 = arith.constant 1 : index
    %c0_11 = arith.constant 0 : index
    %c0_12 = arith.constant 0 : index
    %21 = vector.load %arg2[%c1, %c0_11, %c0_12] : memref<3x128x128xf32, #tpu.memory_space<vmem>>, vector<1x128x128xf32>
    %22 = vector.shape_cast %21 : vector<1x128x128xf32> to vector<128x128xf32>
    %cst_13 = arith.constant dense<0.000000e+00> : vector<16x128xf32>
    %23 = tpu.matmul %20, %22, %cst_13 {dimension_numbers = #tpu.dot_dimension_numbers<[1], [0], [0], [1], [0, 0, 1, 1], [], []>} : vector<16x128xf32>, vector<128x128xf32>, vector<16x128xf32> -> vector<16x128xf32>
    %c1_14 = arith.constant 1 : index
    %c0_15 = arith.constant 0 : index
    %c0_16 = arith.constant 0 : index
    %24 = vector.load %arg3[%c1_14, %c0_15, %c0_16] : memref<3x1x128xf32, #tpu.memory_space<vmem>>, vector<1x1x128xf32>
    %25 = vector.shape_cast %24 : vector<1x1x128xf32> to vector<1x128xf32>
    %26 = vector.broadcast %25 : vector<1x128xf32> to vector<16x128xf32>
    %27 = arith.addf %23, %26 : vector<16x128xf32>
    %cst_17 = arith.constant 2.000000e+01 : f32
    %28 = vector.broadcast %cst_17 : f32 to vector<16x128xf32>
    %29 = arith.minimumf %27, %28 : vector<16x128xf32>
    %30 = math.exp %29 : vector<16x128xf32>
    %cst_18 = arith.constant 2.000000e+00 : f32
    %31 = vector.broadcast %cst_18 : f32 to vector<16x128xf32>
    %32 = arith.addf %30, %31 : vector<16x128xf32>
    %33 = arith.mulf %30, %32 : vector<16x128xf32>
    %cst_19 = arith.constant 2.000000e+01 : f32
    %34 = vector.broadcast %cst_19 : f32 to vector<16x128xf32>
    %35 = arith.cmpf ogt, %27, %34 : vector<16x128xf32>
    %cst_20 = arith.constant 2.000000e+00 : f32
    %36 = vector.broadcast %cst_20 : f32 to vector<16x128xf32>
    %37 = arith.addf %33, %36 : vector<16x128xf32>
    %38 = arith.divf %33, %37 : vector<16x128xf32>
    %39 = arith.mulf %27, %38 : vector<16x128xf32>
    %40 = arith.select %35, %27, %39 : vector<16x128xi1>, vector<16x128xf32>
    %c2 = arith.constant 2 : index
    %c0_21 = arith.constant 0 : index
    %c0_22 = arith.constant 0 : index
    %41 = vector.load %arg2[%c2, %c0_21, %c0_22] : memref<3x128x128xf32, #tpu.memory_space<vmem>>, vector<1x128x128xf32>
    %42 = vector.shape_cast %41 : vector<1x128x128xf32> to vector<128x128xf32>
    %cst_23 = arith.constant dense<0.000000e+00> : vector<16x128xf32>
    %43 = tpu.matmul %40, %42, %cst_23 {dimension_numbers = #tpu.dot_dimension_numbers<[1], [0], [0], [1], [0, 0, 1, 1], [], []>} : vector<16x128xf32>, vector<128x128xf32>, vector<16x128xf32> -> vector<16x128xf32>
    %c2_24 = arith.constant 2 : index
    %c0_25 = arith.constant 0 : index
    %c0_26 = arith.constant 0 : index
    %44 = vector.load %arg3[%c2_24, %c0_25, %c0_26] : memref<3x1x128xf32, #tpu.memory_space<vmem>>, vector<1x1x128xf32>
    %45 = vector.shape_cast %44 : vector<1x1x128xf32> to vector<1x128xf32>
    %46 = vector.broadcast %45 : vector<1x128xf32> to vector<16x128xf32>
    %47 = arith.addf %43, %46 : vector<16x128xf32>
    %cst_27 = arith.constant 2.000000e+01 : f32
    %48 = vector.broadcast %cst_27 : f32 to vector<16x128xf32>
    %49 = arith.minimumf %47, %48 : vector<16x128xf32>
    %50 = math.exp %49 : vector<16x128xf32>
    %cst_28 = arith.constant 2.000000e+00 : f32
    %51 = vector.broadcast %cst_28 : f32 to vector<16x128xf32>
    %52 = arith.addf %50, %51 : vector<16x128xf32>
    %53 = arith.mulf %50, %52 : vector<16x128xf32>
    %cst_29 = arith.constant 2.000000e+01 : f32
    %54 = vector.broadcast %cst_29 : f32 to vector<16x128xf32>
    %55 = arith.cmpf ogt, %47, %54 : vector<16x128xf32>
    %cst_30 = arith.constant 2.000000e+00 : f32
    %56 = vector.broadcast %cst_30 : f32 to vector<16x128xf32>
    %57 = arith.addf %53, %56 : vector<16x128xf32>
    %58 = arith.divf %53, %57 : vector<16x128xf32>
    %59 = arith.mulf %47, %58 : vector<16x128xf32>
    %60 = arith.select %55, %47, %59 : vector<16x128xi1>, vector<16x128xf32>
    %c0_31 = arith.constant 0 : index
    %c0_32 = arith.constant 0 : index
    %61 = vector.load %arg4[%c0_31, %c0_32] : memref<16x128xf32, #tpu.memory_space<vmem>>, vector<16x128xf32>
    tpu.vector_store %arg4[%c0_31, %c0_32], %60 {strides = array<i32>} : memref<16x128xf32, #tpu.memory_space<vmem>>, vector<16x128xf32>,
    return
  }
  func.func @transform_0(%arg0: i32) -> (i32, i32) {
    %c0_i32 = arith.constant 0 : i32
    %c0_i32_0 = arith.constant 0 : i32
    return %arg0, %c0_i32 : i32, i32
  }
  func.func @transform_1(%arg0: i32) -> (i32, i32, i32) {
    %c0_i32 = arith.constant 0 : i32
    %c0_i32_0 = arith.constant 0 : i32
    %c0_i32_1 = arith.constant 0 : i32
    %c0_i32_2 = arith.constant 0 : i32
    return %c0_i32, %c0_i32_0, %c0_i32_1 : i32, i32, i32
  }
  func.func @transform_2(%arg0: i32) -> (i32, i32, i32) {
    %c0_i32 = arith.constant 0 : i32
    %c0_i32_0 = arith.constant 0 : i32
    %c0_i32_1 = arith.constant 0 : i32
    %c0_i32_2 = arith.constant 0 : i32
    return %c0_i32, %c0_i32_0, %c0_i32_1 : i32, i32, i32
  }
  func.func @transform_3(%arg0: i32) -> (i32, i32) {
    %c0_i32 = arith.constant 0 : i32
    %c0_i32_0 = arith.constant 0 : i32
    return %arg0, %c0_i32 : i32, i32
  }
}

module attributes {stable_mosaic.version = 11 : i64} {
  func.func @_ffn_kernel(%arg0: i32, %arg1: memref<16x128xf32, #tpu.memory_space<vmem>>, %arg2: memref<3x128x128xf32, #tpu.memory_space<vmem>>, %arg3: memref<3x1x128xf32, #tpu.memory_space<vmem>>, %arg4: memref<16x128xf32, #tpu.memory_space<vmem>>) attributes {dimension_semantics = [#tpu.dimension_semantics<parallel>], iteration_bounds = array<i64: 1>, scalar_prefetch = 0 : i64, scratch_operands = 0 : i64, tpu.core_type = #tpu.core_type<tc>, window_params = [{transform_indices = @transform_0, window_bounds = array<i64: 16, 128>}, {pipeline_mode = #tpu.pipeline_mode<synchronous>, transform_indices = @transform_1, window_bounds = array<i64: 3, 128, 128>}, {pipeline_mode = #tpu.pipeline_mode<synchronous>, transform_indices = @transform_2, window_bounds = array<i64: 3, 1, 128>}, {transform_indices = @transform_3, window_bounds = array<i64: 16, 128>}]} {
    %c0 = arith.constant 0 : index
    %c0_0 = arith.constant 0 : index
    %0 = vector.load %arg1[%c0, %c0_0] : memref<16x128xf32, #tpu.memory_space<vmem>>, vector<16x128xf32>
    %c0_1 = arith.constant 0 : index
    %c0_2 = arith.constant 0 : index
    %c0_3 = arith.constant 0 : index
    %1 = vector.load %arg2[%c0_1, %c0_2, %c0_3] : memref<3x128x128xf32, #tpu.memory_space<vmem>>, vector<1x128x128xf32>
    %2 = vector.shape_cast %1 : vector<1x128x128xf32> to vector<128x128xf32>
    %cst = arith.constant dense<0.000000e+00> : vector<16x128xf32>
    %3 = tpu.matmul %0, %2, %cst {dimension_numbers = #tpu.dot_dimension_numbers<[1], [0], [0], [1], [0, 0, 1, 1], [], []>} : vector<16x128xf32>, vector<128x128xf32>, vector<16x128xf32> -> vector<16x128xf32>
    %c0_4 = arith.constant 0 : index
    %c0_5 = arith.constant 0 : index
    %c0_6 = arith.constant 0 : index
    %4 = vector.load %arg3[%c0_4, %c0_5, %c0_6] : memref<3x1x128xf32, #tpu.memory_space<vmem>>, vector<1x1x128xf32>
    %5 = vector.shape_cast %4 : vector<1x1x128xf32> to vector<1x128xf32>
    %6 = vector.broadcast %5 : vector<1x128xf32> to vector<16x128xf32>
    %7 = arith.addf %3, %6 : vector<16x128xf32>
    %cst_7 = arith.constant 2.000000e+01 : f32
    %8 = vector.broadcast %cst_7 : f32 to vector<16x128xf32>
    %9 = arith.minimumf %7, %8 : vector<16x128xf32>
    %10 = math.exp %9 : vector<16x128xf32>
    %cst_8 = arith.constant 2.000000e+00 : f32
    %11 = vector.broadcast %cst_8 : f32 to vector<16x128xf32>
    %12 = arith.addf %10, %11 : vector<16x128xf32>
    %13 = arith.mulf %10, %12 : vector<16x128xf32>
    %cst_9 = arith.constant 2.000000e+01 : f32
    %14 = vector.broadcast %cst_9 : f32 to vector<16x128xf32>
    %15 = arith.cmpf ogt, %7, %14 : vector<16x128xf32>
    %cst_10 = arith.constant 2.000000e+00 : f32
    %16 = vector.broadcast %cst_10 : f32 to vector<16x128xf32>
    %17 = arith.addf %13, %16 : vector<16x128xf32>
    %18 = arith.divf %13, %17 : vector<16x128xf32>
    %19 = arith.mulf %7, %18 : vector<16x128xf32>
    %20 = arith.select %15, %7, %19 : vector<16x128xi1>, vector<16x128xf32>
    %c1 = arith.constant 1 : index
    %c0_11 = arith.constant 0 : index
    %c0_12 = arith.constant 0 : index
    %21 = vector.load %arg2[%c1, %c0_11, %c0_12] : memref<3x128x128xf32, #tpu.memory_space<vmem>>, vector<1x128x128xf32>
    %22 = vector.shape_cast %21 : vector<1x128x128xf32> to vector<128x128xf32>
    %cst_13 = arith.constant dense<0.000000e+00> : vector<16x128xf32>
    %23 = tpu.matmul %20, %22, %cst_13 {dimension_numbers = #tpu.dot_dimension_numbers<[1], [0], [0], [1], [0, 0, 1, 1], [], []>} : vector<16x128xf32>, vector<128x128xf32>, vector<16x128xf32> -> vector<16x128xf32>
    %c1_14 = arith.constant 1 : index
    %c0_15 = arith.constant 0 : index
    %c0_16 = arith.constant 0 : index
    %24 = vector.load %arg3[%c1_14, %c0_15, %c0_16] : memref<3x1x128xf32, #tpu.memory_space<vmem>>, vector<1x1x128xf32>
    %25 = vector.shape_cast %24 : vector<1x1x128xf32> to vector<1x128xf32>
    %26 = vector.broadcast %25 : vector<1x128xf32> to vector<16x128xf32>
    %27 = arith.addf %23, %26 : vector<16x128xf32>
    %cst_17 = arith.constant 2.000000e+01 : f32
    %28 = vector.broadcast %cst_17 : f32 to vector<16x128xf32>
    %29 = arith.minimumf %27, %28 : vector<16x128xf32>
    %30 = math.exp %29 : vector<16x128xf32>
    %cst_18 = arith.constant 2.000000e+00 : f32
    %31 = vector.broadcast %cst_18 : f32 to vector<16x128xf32>
    %32 = arith.addf %30, %31 : vector<16x128xf32>
    %33 = arith.mulf %30, %32 : vector<16x128xf32>
    %cst_19 = arith.constant 2.000000e+01 : f32
    %34 = vector.broadcast %cst_19 : f32 to vector<16x128xf32>
    %35 = arith.cmpf ogt, %27, %34 : vector<16x128xf32>
    %cst_20 = arith.constant 2.000000e+00 : f32
    %36 = vector.broadcast %cst_20 : f32 to vector<16x128xf32>
    %37 = arith.addf %33, %36 : vector<16x128xf32>
    %38 = arith.divf %33, %37 : vector<16x128xf32>
    %39 = arith.mulf %27, %38 : vector<16x128xf32>
    %40 = arith.select %35, %27, %39 : vector<16x128xi1>, vector<16x128xf32>
    %c2 = arith.constant 2 : index
    %c0_21 = arith.constant 0 : index
    %c0_22 = arith.constant 0 : index
    %41 = vector.load %arg2[%c2, %c0_21, %c0_22] : memref<3x128x128xf32, #tpu.memory_space<vmem>>, vector<1x128x128xf32>
    %42 = vector.shape_cast %41 : vector<1x128x128xf32> to vector<128x128xf32>
    %cst_23 = arith.constant dense<0.000000e+00> : vector<16x128xf32>
    %43 = tpu.matmul %40, %42, %cst_23 {dimension_numbers = #tpu.dot_dimension_numbers<[1], [0], [0], [1], [0, 0, 1, 1], [], []>} : vector<16x128xf32>, vector<128x128xf32>, vector<16x128xf32> -> vector<16x128xf32>
    %c2_24 = arith.constant 2 : index
    %c0_25 = arith.constant 0 : index
    %c0_26 = arith.constant 0 : index
    %44 = vector.load %arg3[%c2_24, %c0_25, %c0_26] : memref<3x1x128xf32, #tpu.memory_space<vmem>>, vector<1x1x128xf32>
    %45 = vector.shape_cast %44 : vector<1x1x128xf32> to vector<1x128xf32>
    %46 = vector.broadcast %45 : vector<1x128xf32> to vector<16x128xf32>
    %47 = arith.addf %43, %46 : vector<16x128xf32>
    %cst_27 = arith.constant 2.000000e+01 : f32
    %48 = vector.broadcast %cst_27 : f32 to vector<16x128xf32>
    %49 = arith.minimumf %47, %48 : vector<16x128xf32>
    %50 = math.exp %49 : vector<16x128xf32>
    %cst_28 = arith.constant 2.000000e+00 : f32
    %51 = vector.broadcast %cst_28 : f32 to vector<16x128xf32>
    %52 = arith.addf %50, %51 : vector<16x128xf32>
    %53 = arith.mulf %50, %52 : vector<16x128xf32>
    %cst_29 = arith.constant 2.000000e+01 : f32
    %54 = vector.broadcast %cst_29 : f32 to vector<16x128xf32>
    %55 = arith.cmpf ogt, %47, %54 : vector<16x128xf32>
    %cst_30 = arith.constant 2.000000e+00 : f32
    %56 = vector.broadcast %cst_30 : f32 to vector<16x128xf32>
    %57 = arith.addf %53, %56 : vector<16x128xf32>
    %58 = arith.divf %53, %57 : vector<16x128xf32>
    %59 = arith.mulf %47, %58 : vector<16x128xf32>
    %60 = arith.select %55, %47, %59 : vector<16x128xi1>, vector<16x128xf32>
    %c0_31 = arith.constant 0 : index
    %c0_32 = arith.constant 0 : index
    %61 = vector.load %arg4[%c0_31, %c0_32] : memref<16x128xf32, #tpu.memory_space<vmem>>, vector<16x128xf32>
    tpu.vector_store %arg4[%c0_31, %c0_32], %60 {strides = array<i32>} : memref<16x128xf32, #tpu.memory_space<vmem>>, vector<16x128xf32>,
    return
  }
  func.func @transform_0(%arg0: i32) -> (i32, i32) {
    %c0_i32 = arith.constant 0 : i32
    %c0_i32_0 = arith.constant 0 : i32
    return %arg0, %c0_i32 : i32, i32
  }
  func.func @transform_1(%arg0: i32) -> (i32, i32, i32) {
    %c0_i32 = arith.constant 0 : i32
    %c0_i32_0 = arith.constant 0 : i32
    %c0_i32_1 = arith.constant 0 : i32
    %c0_i32_2 = arith.constant 0 : i32
    return %c0_i32, %c0_i32_0, %c0_i32_1 : i32, i32, i32
  }
  func.func @transform_2(%arg0: i32) -> (i32, i32, i32) {
    %c0_i32 = arith.constant 0 : i32
    %c0_i32_0 = arith.constant 0 : i32
    %c0_i32_1 = arith.constant 0 : i32
    %c0_i32_2 = arith.constant 0 : i32
    return %c0_i32, %c0_i32_0, %c0_i32_1 : i32, i32, i32
  }
  func.func @transform_3(%arg0: i32) -> (i32, i32) {
    %c0_i32 = arith.constant 0 : i32
    %c0_i32_0 = arith.constant 0 : i32
    return %arg0, %c0_i32 : i32, i32
  }
}

</mosaic_0001>

<llo_original>
// kernel: tpu_custom_call.1
$region0: #{tpu_custom_call.1}
  #allocation0 [shape = 'u32[]', space=smem, size = 0x4, offset = 0x4, fixed_abs, tag = 'smem constant byte address 0x4 - core index']
  #allocation1 [shape = 'u32[144,128]{1,0:T(1,128)}', space=vmem, size = 0x12000, scoped, tag = 'internal scratch']
  %s0 = inlined_call_operand.hbm [shape: f32[16,128], index: 0, kind: input, shape index: {}]
  %s1 = inlined_call_operand.hbm [shape: f32[3,128,128], index: 1, kind: input, shape index: {}]
  %s2 = inlined_call_operand.vmem [shape: f32[3,1,128], index: 2, kind: input, shape index: {}]
  %s3 = inlined_call_operand.hbm [shape: f32[16,128], index: 3, kind: output, shape index: {}]
  %s4 = sld [smem:[#allocation0]]
  $region30: #{tpu_custom_call.1} parent=0
    _
  %s6 = ssub.s32 1, %s4
  %s7 = scalar_select 0, %s6, %s4
  $region1: #{tpu_custom_call.1} parent=0
    #allocation2 [shape = 'u8[8192]{0}', space=vmem, size = 0x2000, scoped, tag = 'input window, operand 0, single buffered']
    #allocation3 [shape = 's32[1]{0}', space=sflag, size = 0x4, scoped, tag = 'scoped memory for tpu_custom_call.1']
    #allocation4 [shape = 's32[1]{0}', space=sflag, size = 0x4, scoped, tag = 'scoped memory for tpu_custom_call.1']
    #allocation5 [shape = 'u8[196608]{0}', space=vmem, size = 0x30000, scoped, tag = 'input window, operand 1, single buffered']
    #allocation6 [shape = 's32[1]{0}', space=sflag, size = 0x4, scoped, tag = 'scoped memory for tpu_custom_call.1']
    #allocation7 [shape = 'u8[8192]{0}', space=vmem, size = 0x2000, scoped, tag = 'output window, operand 0, single buffered']
    %8 = vsyncpa [#allocation3], 0
    %9 = vsyncpa [#allocation6], 0
    %10 = vsyncpa [#allocation4], 0
    // Predicated region
    $region2: #{tpu_custom_call.1} parent=1 // pred_check
      _
    $region3: #{tpu_custom_call.1} parent=1 // pred_check_branch
      %12 = sbr.rel (0) target = $region5
    $region4: #{tpu_custom_call.1} parent=1 // pred_region
      %s14 = ssub.s32 256, 256
      %15 = vsyncadd [#allocation3], %s14
      %s16 = sshll.u32 [#allocation2], 4
      %s17 = int_to_ptr.vmem [resolvable:$true] %s16
      %22 = dma.hbm_to_vmem [thread:$0]  %s0, 256, %s17, [#allocation3], 128, 128, 8
    $region5: #{tpu_custom_call.1} parent=1 // pred_fallthru
      _
    // Predicated region
    $region6: #{tpu_custom_call.1} parent=1 // pred_check
      _
    $region7: #{tpu_custom_call.1} parent=1 // pred_check_branch
      %24 = sbr.rel (0) target = $region9
    $region8: #{tpu_custom_call.1} parent=1 // pred_region
      %s26 = ssub.s32 6144, 6144
      %27 = vsyncadd [#allocation6], %s26
      %s28 = sshll.u32 [#allocation5], 4
      %s29 = int_to_ptr.vmem [resolvable:$true] %s28
      %34 = dma.hbm_to_vmem [thread:$0]  %s1, 6144, %s29, [#allocation6], 128, 128, 8
    $region9: #{tpu_custom_call.1} parent=1 // pred_fallthru
      _
    // Predicated region
    $region10: #{tpu_custom_call.1} parent=1 // pred_check
      _
    $region11: #{tpu_custom_call.1} parent=1 // pred_check_branch
      %36 = sbr.rel (0) target = $region13
    $region12: #{tpu_custom_call.1} parent=1 // pred_region
      _
    $region13: #{tpu_custom_call.1} parent=1 // pred_fallthru
      _
    // Predicated region
    $region14: #{tpu_custom_call.1} parent=1 // pred_check
      _
    $region15: #{tpu_custom_call.1} parent=1 // pred_check_branch
      %38 = sbr.rel (0) target = $region17
    $region16: #{tpu_custom_call.1} parent=1 // pred_region
      %39 = dma.done [#allocation3], 256
    $region17: #{tpu_custom_call.1} parent=1 // pred_fallthru
      _
    // Predicated region
    $region18: #{tpu_custom_call.1} parent=1 // pred_check
      _
    $region19: #{tpu_custom_call.1} parent=1 // pred_check_branch
      %41 = sbr.rel (0) target = $region21
    $region20: #{tpu_custom_call.1} parent=1 // pred_region
      %42 = dma.done [#allocation6], 6144
    $region21: #{tpu_custom_call.1} parent=1 // pred_fallthru
      _
    %v43 = vld [vmem:[#allocation2] sm:$0xff]
    %v44 = vld [vmem:[#allocation2 + $0x8] sm:$0xff]
    %v45 = vld [vmem:[#allocation5] sm:$0xff]
    %v46 = vld [vmem:[#allocation5 + $0x8] sm:$0xff]
    %v47 = vld [vmem:[#allocation5 + $0x10] sm:$0xff]
    %v48 = vld [vmem:[#allocation5 + $0x18] sm:$0xff]
    %v49 = vld [vmem:[#allocation5 + $0x20] sm:$0xff]
    %v50 = vld [vmem:[#allocation5 + $0x28] sm:$0xff]
    %v51 = vld [vmem:[#allocation5 + $0x30] sm:$0xff]
    %v52 = vld [vmem:[#allocation5 + $0x38] sm:$0xff]
    %v53 = vld [vmem:[#allocation5 + $0x40] sm:$0xff]
    %v54 = vld [vmem:[#allocation5 + $0x48] sm:$0xff]
    %v55 = vld [vmem:[#allocation5 + $0x50] sm:$0xff]
    %v56 = vld [vmem:[#allocation5 + $0x58] sm:$0xff]
    %v57 = vld [vmem:[#allocation5 + $0x60] sm:$0xff]
    %v58 = vld [vmem:[#allocation5 + $0x68] sm:$0xff]
    %v59 = vld [vmem:[#allocation5 + $0x70] sm:$0xff]
    %v60 = vld [vmem:[#allocation5 + $0x78] sm:$0xff]
    %v61 = vld [vmem:[%s2] sm:$0x1]
    %v63 = vlaneseq
    %v64 = vshrl.u32 %v63, 7
    %v65 = vsub.s32 0, %v64
    %v66 = vrot.slane %v61, %v65
    %68 = vmatprep.subr.mxu0 0.0
    %69 = vmatpush1.msra.mxu0 %v60
    %70 = vmatprep.subr.mxu0 0.0
    %71 = vmatpush1.msra.mxu0 %v59
    %72 = vmatprep.subr.mxu0 0.0
    %73 = vmatpush1.msra.mxu0 %v58
    %74 = vmatprep.subr.mxu0 0.0
    %75 = vmatpush1.msra.mxu0 %v57
    %76 = vmatprep.subr.mxu0 0.0
    %77 = vmatpush1.msra.mxu0 %v56
    %78 = vmatprep.subr.mxu0 0.0
    %79 = vmatpush1.msra.mxu0 %v55
    %80 = vmatprep.subr.mxu0 0.0
    %81 = vmatpush1.msra.mxu0 %v54
    %82 = vmatprep.subr.mxu0 0.0
    %83 = vmatpush1.msra.mxu0 %v53
    %84 = vmatprep.subr.mxu0 0.0
    %85 = vmatpush1.msra.mxu0 %v52
    %86 = vmatprep.subr.mxu0 0.0
    %87 = vmatpush1.msra.mxu0 %v51
    %88 = vmatprep.subr.mxu0 0.0
    %89 = vmatpush1.msra.mxu0 %v50
    %90 = vmatprep.subr.mxu0 0.0
    %91 = vmatpush1.msra.mxu0 %v49
    %92 = vmatprep.subr.mxu0 0.0
    %93 = vmatpush1.msra.mxu0 %v48
    %94 = vmatprep.subr.mxu0 0.0
    %95 = vmatpush1.msra.mxu0 %v47
    %96 = vmatprep.subr.mxu0 0.0
    %97 = vmatpush1.msra.mxu0 %v46
    %98 = vmatprep.subr.mxu0 0.0
    %99 = vmatpush1.msra.mxu0 %v45
    %100 = vmatprep.subr.mxu0 0.0
    %101 = vmatpush2.msra.mxu0 0.0
    %102 = vmatprep.subr.mxu0 0.0
    %103 = vmatpush2.msra.mxu0 0.0
    %104 = vmatprep.subr.mxu0 0.0
    %105 = vmatpush2.msra.mxu0 0.0
    %106 = vmatprep.subr.mxu0 0.0
    %107 = vmatpush2.msra.mxu0 0.0
    %108 = vmatprep.subr.mxu0 0.0
    %109 = vmatpush2.msra.mxu0 0.0
    %110 = vmatprep.subr.mxu0 0.0
    %111 = vmatpush2.msra.mxu0 0.0
    %112 = vmatprep.subr.mxu0 0.0
    %113 = vmatpush2.msra.mxu0 0.0
    %114 = vmatprep.subr.mxu0 0.0
    %115 = vmatpush2.msra.mxu0 0.0
    %116 = vmatprep.subr.mxu0 0.0
    %117 = vmatpush2.msra.mxu0 0.0
    %118 = vmatprep.subr.mxu0 0.0
    %119 = vmatpush2.msra.mxu0 0.0
    %120 = vmatprep.subr.mxu0 0.0
    %121 = vmatpush2.msra.mxu0 0.0
    %122 = vmatprep.subr.mxu0 0.0
    %123 = vmatpush2.msra.mxu0 0.0
    %124 = vmatprep.subr.mxu0 0.0
    %125 = vmatpush2.msra.mxu0 0.0
    %126 = vmatprep.subr.mxu0 0.0
    %127 = vmatpush2.msra.mxu0 0.0
    %128 = vmatprep.subr.mxu0 0.0
    %129 = vmatpush2.msra.mxu0 0.0
    %130 = vmatprep.subr.mxu0 0.0
    %131 = vmatpush2.msra.mxu0 0.0
    %132 = vmatprep.mubr.f32.mxu0 0.0
    %133 = vmatmul.mubr.f32.gmra.mxu0 %v43
    %v134 = vpop.f32.mrf.mxu0
    %v135 = vadd.f32 %v66, %v134
    %v136 = vpop.f32.mrf.mxu0
    %137 = vmatprep.mubr.f32.mxu0 0.0
    %138 = vmatmul.mubr.f32.gmra.mxu0 %v44
    %v139 = vpop.f32.mrf.mxu0
    %v140 = vadd.f32 %v66, %v139
    %v141 = vpop.f32.mrf.mxu0
    %142 = vdwg.mxu0
    %v143 = vmin.f32 %v135, 20.0
    %v144 = vmin.f32 %v140, 20.0
    %v145 = vmul.f32 %v143, 1.442695
    %v146 = vpow.pop %v145
    %v147 = vmul.f32 %v144, 1.442695
    %v148 = vpow.pop %v147
    %v149 = vadd.f32 %v146, 2.0
    %v150 = vadd.f32 %v148, 2.0
    %v151 = vmul.f32 %v146, %v149
    %v152 = vmul.f32 %v148, %v150
    %vm153 = vcmp.gt.f32.partialorder %v135, 20.0
    %vm154 = vcmp.gt.f32.partialorder %v140, 20.0
    %v155 = vadd.f32 %v151, 2.0
    %v156 = vadd.f32 %v152, 2.0
    %v157 = vrcp.pop %v155
    %v158 = vmul.f32 %v151, %v157
    %v159 = vrcp.pop %v156
    %v160 = vmul.f32 %v152, %v159
    %v161 = vmul.f32 %v135, %v158
    %v162 = vmul.f32 %v140, %v160
    %v163 = vsel %vm153, %v135, %v161
    %v164 = vsel %vm154, %v140, %v162
    %s165 = scalar_lea.vmem [#allocation5], 128
    %v166 = vld [vmem:[%s165] sm:$0xff]
    %v167 = vld [vmem:[%s165 + $0x8] sm:$0xff]
    %v168 = vld [vmem:[%s165 + $0x10] sm:$0xff]
    %v169 = vld [vmem:[%s165 + $0x18] sm:$0xff]
    %v170 = vld [vmem:[%s165 + $0x20] sm:$0xff]
    %v171 = vld [vmem:[%s165 + $0x28] sm:$0xff]
    %v172 = vld [vmem:[%s165 + $0x30] sm:$0xff]
    %v173 = vld [vmem:[%s165 + $0x38] sm:$0xff]
    %v174 = vld [vmem:[%s165 + $0x40] sm:$0xff]
    %v175 = vld [vmem:[%s165 + $0x48] sm:$0xff]
    %v176 = vld [vmem:[%s165 + $0x50] sm:$0xff]
    %v177 = vld [vmem:[%s165 + $0x58] sm:$0xff]
    %v178 = vld [vmem:[%s165 + $0x60] sm:$0xff]
    %v179 = vld [vmem:[%s165 + $0x68] sm:$0xff]
    %v180 = vld [vmem:[%s165 + $0x70] sm:$0xff]
    %v181 = vld [vmem:[%s165 + $0x78] sm:$0xff]
    %s182 = scalar_lea.vmem %s2, 1
    %v183 = vld [vmem:[%s182] sm:$0x1]
    %v185 = vlaneseq
    %v186 = vshrl.u32 %v185, 7
    %v187 = vsub.s32 0, %v186
    %v188 = vrot.slane %v183, %v187
    %190 = vmatprep.subr.mxu0 0.0
    %191 = vmatpush1.msra.mxu0 %v181
    %192 = vmatprep.subr.mxu0 0.0
    %193 = vmatpush1.msra.mxu0 %v180
    %194 = vmatprep.subr.mxu0 0.0
    %195 = vmatpush1.msra.mxu0 %v179
    %196 = vmatprep.subr.mxu0 0.0
    %197 = vmatpush1.msra.mxu0 %v178
    %198 = vmatprep.subr.mxu0 0.0
    %199 = vmatpush1.msra.mxu0 %v177
    %200 = vmatprep.subr.mxu0 0.0
    %201 = vmatpush1.msra.mxu0 %v176
    %202 = vmatprep.subr.mxu0 0.0
    %203 = vmatpush1.msra.mxu0 %v175
    %204 = vmatprep.subr.mxu0 0.0
    %205 = vmatpush1.msra.mxu0 %v174
    %206 = vmatprep.subr.mxu0 0.0
    %207 = vmatpush1.msra.mxu0 %v173
    %208 = vmatprep.subr.mxu0 0.0
    %209 = vmatpush1.msra.mxu0 %v172
    %210 = vmatprep.subr.mxu0 0.0
    %211 = vmatpush1.msra.mxu0 %v171
    %212 = vmatprep.subr.mxu0 0.0
    %213 = vmatpush1.msra.mxu0 %v170
    %214 = vmatprep.subr.mxu0 0.0
    %215 = vmatpush1.msra.mxu0 %v169
    %216 = vmatprep.subr.mxu0 0.0
    %217 = vmatpush1.msra.mxu0 %v168
    %218 = vmatprep.subr.mxu0 0.0
    %219 = vmatpush1.msra.mxu0 %v167
    %220 = vmatprep.subr.mxu0 0.0
    %221 = vmatpush1.msra.mxu0 %v166
    %222 = vmatprep.subr.mxu0 0.0
    %223 = vmatpush2.msra.mxu0 0.0
    %224 = vmatprep.subr.mxu0 0.0
    %225 = vmatpush2.msra.mxu0 0.0
    %226 = vmatprep.subr.mxu0 0.0
    %227 = vmatpush2.msra.mxu0 0.0
    %228 = vmatprep.subr.mxu0 0.0
    %229 = vmatpush2.msra.mxu0 0.0
    %230 = vmatprep.subr.mxu0 0.0
    %231 = vmatpush2.msra.mxu0 0.0
    %232 = vmatprep.subr.mxu0 0.0
    %233 = vmatpush2.msra.mxu0 0.0
    %234 = vmatprep.subr.mxu0 0.0
    %235 = vmatpush2.msra.mxu0 0.0
    %236 = vmatprep.subr.mxu0 0.0
    %237 = vmatpush2.msra.mxu0 0.0
    %238 = vmatprep.subr.mxu0 0.0
    %239 = vmatpush2.msra.mxu0 0.0
    %240 = vmatprep.subr.mxu0 0.0
    %241 = vmatpush2.msra.mxu0 0.0
    %242 = vmatprep.subr.mxu0 0.0
    %243 = vmatpush2.msra.mxu0 0.0
    %244 = vmatprep.subr.mxu0 0.0
    %245 = vmatpush2.msra.mxu0 0.0
    %246 = vmatprep.subr.mxu0 0.0
    %247 = vmatpush2.msra.mxu0 0.0
    %248 = vmatprep.subr.mxu0 0.0
    %249 = vmatpush2.msra.mxu0 0.0
    %250 = vmatprep.subr.mxu0 0.0
    %251 = vmatpush2.msra.mxu0 0.0
    %252 = vmatprep.subr.mxu0 0.0
    %253 = vmatpush2.msra.mxu0 0.0
    %254 = vmatprep.mubr.f32.mxu0 0.0
    %255 = vmatmul.mubr.f32.gmra.mxu0 %v163
    %v256 = vpop.f32.mrf.mxu0
    %v257 = vadd.f32 %v188, %v256
    %v258 = vpop.f32.mrf.mxu0
    %259 = vmatprep.mubr.f32.mxu0 0.0
    %260 = vmatmul.mubr.f32.gmra.mxu0 %v164
    %v261 = vpop.f32.mrf.mxu0
    %v262 = vadd.f32 %v188, %v261
    %v263 = vpop.f32.mrf.mxu0
    %264 = vdwg.mxu0
    %v265 = vmin.f32 %v257, 20.0
    %v266 = vmin.f32 %v262, 20.0
    %v267 = vmul.f32 %v265, 1.442695
    %v268 = vpow.pop %v267
    %v269 = vmul.f32 %v266, 1.442695
    %v270 = vpow.pop %v269
    %v271 = vadd.f32 %v268, 2.0
    %v272 = vadd.f32 %v270, 2.0
    %v273 = vmul.f32 %v268, %v271
    %v274 = vmul.f32 %v270, %v272
    %vm275 = vcmp.gt.f32.partialorder %v257, 20.0
    %vm276 = vcmp.gt.f32.partialorder %v262, 20.0
    %v277 = vadd.f32 %v273, 2.0
    %v278 = vadd.f32 %v274, 2.0
    %v279 = vrcp.pop %v277
    %v280 = vmul.f32 %v273, %v279
    %v281 = vrcp.pop %v278
    %v282 = vmul.f32 %v274, %v281
    %v283 = vmul.f32 %v257, %v280
    %v284 = vmul.f32 %v262, %v282
    %v285 = vsel %vm275, %v257, %v283
    %v286 = vsel %vm276, %v262, %v284
    %s287 = scalar_lea.vmem [#allocation5], 256
    %v288 = vld [vmem:[%s287] sm:$0xff]
    %v289 = vld [vmem:[%s287 + $0x8] sm:$0xff]
    %v290 = vld [vmem:[%s287 + $0x10] sm:$0xff]
    %v291 = vld [vmem:[%s287 + $0x18] sm:$0xff]
    %v292 = vld [vmem:[%s287 + $0x20] sm:$0xff]
    %v293 = vld [vmem:[%s287 + $0x28] sm:$0xff]
    %v294 = vld [vmem:[%s287 + $0x30] sm:$0xff]
    %v295 = vld [vmem:[%s287 + $0x38] sm:$0xff]
    %v296 = vld [vmem:[%s287 + $0x40] sm:$0xff]
    %v297 = vld [vmem:[%s287 + $0x48] sm:$0xff]
    %v298 = vld [vmem:[%s287 + $0x50] sm:$0xff]
    %v299 = vld [vmem:[%s287 + $0x58] sm:$0xff]
    %v300 = vld [vmem:[%s287 + $0x60] sm:$0xff]
    %v301 = vld [vmem:[%s287 + $0x68] sm:$0xff]
    %v302 = vld [vmem:[%s287 + $0x70] sm:$0xff]
    %v303 = vld [vmem:[%s287 + $0x78] sm:$0xff]
    %s304 = scalar_lea.vmem %s2, 2
    %v305 = vld [vmem:[%s304] sm:$0x1]
    %v307 = vlaneseq
    %v308 = vshrl.u32 %v307, 7
    %v309 = vsub.s32 0, %v308
    %v310 = vrot.slane %v305, %v309
    %312 = vmatprep.subr.mxu0 0.0
    %313 = vmatpush1.msra.mxu0 %v303
    %314 = vmatprep.subr.mxu0 0.0
    %315 = vmatpush1.msra.mxu0 %v302
    %316 = vmatprep.subr.mxu0 0.0
    %317 = vmatpush1.msra.mxu0 %v301
    %318 = vmatprep.subr.mxu0 0.0
    %319 = vmatpush1.msra.mxu0 %v300
    %320 = vmatprep.subr.mxu0 0.0
    %321 = vmatpush1.msra.mxu0 %v299
    %322 = vmatprep.subr.mxu0 0.0
    %323 = vmatpush1.msra.mxu0 %v298
    %324 = vmatprep.subr.mxu0 0.0
    %325 = vmatpush1.msra.mxu0 %v297
    %326 = vmatprep.subr.mxu0 0.0
    %327 = vmatpush1.msra.mxu0 %v296
    %328 = vmatprep.subr.mxu0 0.0
    %329 = vmatpush1.msra.mxu0 %v295
    %330 = vmatprep.subr.mxu0 0.0
    %331 = vmatpush1.msra.mxu0 %v294
    %332 = vmatprep.subr.mxu0 0.0
    %333 = vmatpush1.msra.mxu0 %v293
    %334 = vmatprep.subr.mxu0 0.0
    %335 = vmatpush1.msra.mxu0 %v292
    %336 = vmatprep.subr.mxu0 0.0
    %337 = vmatpush1.msra.mxu0 %v291
    %338 = vmatprep.subr.mxu0 0.0
    %339 = vmatpush1.msra.mxu0 %v290
    %340 = vmatprep.subr.mxu0 0.0
    %341 = vmatpush1.msra.mxu0 %v289
    %342 = vmatprep.subr.mxu0 0.0
    %343 = vmatpush1.msra.mxu0 %v288
    %344 = vmatprep.subr.mxu0 0.0
    %345 = vmatpush2.msra.mxu0 0.0
    %346 = vmatprep.subr.mxu0 0.0
    %347 = vmatpush2.msra.mxu0 0.0
    %348 = vmatprep.subr.mxu0 0.0
    %349 = vmatpush2.msra.mxu0 0.0
    %350 = vmatprep.subr.mxu0 0.0
    %351 = vmatpush2.msra.mxu0 0.0
    %352 = vmatprep.subr.mxu0 0.0
    %353 = vmatpush2.msra.mxu0 0.0
    %354 = vmatprep.subr.mxu0 0.0
    %355 = vmatpush2.msra.mxu0 0.0
    %356 = vmatprep.subr.mxu0 0.0
    %357 = vmatpush2.msra.mxu0 0.0
    %358 = vmatprep.subr.mxu0 0.0
    %359 = vmatpush2.msra.mxu0 0.0
    %360 = vmatprep.subr.mxu0 0.0
    %361 = vmatpush2.msra.mxu0 0.0
    %362 = vmatprep.subr.mxu0 0.0
    %363 = vmatpush2.msra.mxu0 0.0
    %364 = vmatprep.subr.mxu0 0.0
    %365 = vmatpush2.msra.mxu0 0.0
    %366 = vmatprep.subr.mxu0 0.0
    %367 = vmatpush2.msra.mxu0 0.0
    %368 = vmatprep.subr.mxu0 0.0
    %369 = vmatpush2.msra.mxu0 0.0
    %370 = vmatprep.subr.mxu0 0.0
    %371 = vmatpush2.msra.mxu0 0.0
    %372 = vmatprep.subr.mxu0 0.0
    %373 = vmatpush2.msra.mxu0 0.0
    %374 = vmatprep.subr.mxu0 0.0
    %375 = vmatpush2.msra.mxu0 0.0
    %376 = vmatprep.mubr.f32.mxu0 0.0
    %377 = vmatmul.mubr.f32.gmra.mxu0 %v285
    %v378 = vpop.f32.mrf.mxu0
    %v379 = vadd.f32 %v310, %v378
    %v380 = vpop.f32.mrf.mxu0
    %381 = vmatprep.mubr.f32.mxu0 0.0
    %382 = vmatmul.mubr.f32.gmra.mxu0 %v286
    %v383 = vpop.f32.mrf.mxu0
    %v384 = vadd.f32 %v310, %v383
    %v385 = vpop.f32.mrf.mxu0
    %386 = vdwg.mxu0
    %v387 = vmin.f32 %v379, 20.0
    %v388 = vmin.f32 %v384, 20.0
    %v389 = vmul.f32 %v387, 1.442695
    %v390 = vpow.pop %v389
    %v391 = vmul.f32 %v388, 1.442695
    %v392 = vpow.pop %v391
    %v393 = vadd.f32 %v390, 2.0
    %v394 = vadd.f32 %v392, 2.0
    %v395 = vmul.f32 %v390, %v393
    %v396 = vmul.f32 %v392, %v394
    %vm397 = vcmp.gt.f32.partialorder %v379, 20.0
    %vm398 = vcmp.gt.f32.partialorder %v384, 20.0
    %v399 = vadd.f32 %v395, 2.0
    %v400 = vadd.f32 %v396, 2.0
    %v401 = vrcp.pop %v399
    %v402 = vmul.f32 %v395, %v401
    %v403 = vrcp.pop %v400
    %v404 = vmul.f32 %v396, %v403
    %v405 = vmul.f32 %v379, %v402
    %v406 = vmul.f32 %v384, %v404
    %v407 = vsel %vm397, %v379, %v405
    %v408 = vsel %vm398, %v384, %v406
    %409 = vst [vmem:[#allocation7] sm:$0xff] %v407
    %410 = vst [vmem:[#allocation7 + $0x8] sm:$0xff] %v408
    // Predicated region
    $region22: #{tpu_custom_call.1} parent=1 // pred_check
      _
    $region23: #{tpu_custom_call.1} parent=1 // pred_check_branch
      %412 = sbr.rel (0) target = $region25
    $region24: #{tpu_custom_call.1} parent=1 // pred_region
      %s414 = ssub.s32 256, 256
      %415 = vsyncadd [#allocation4], %s414
      %s416 = sshll.u32 [#allocation7], 4
      %s417 = int_to_ptr.vmem [resolvable:$true] %s416
      %422 = dma.vmem_to_hbm [thread:$0]  %s417, 256, %s3, [#allocation4], 128, 128, 8
    $region25: #{tpu_custom_call.1} parent=1 // pred_fallthru
      _
    // Predicated region
    $region26: #{tpu_custom_call.1} parent=1 // pred_check
      _
    $region27: #{tpu_custom_call.1} parent=1 // pred_check_branch
      %424 = sbr.rel (0) target = $region29
    $region28: #{tpu_custom_call.1} parent=1 // pred_region
      %425 = dma.done [#allocation4], 256
    $region29: #{tpu_custom_call.1} parent=1 // pred_fallthru
      _
    %426 = vsyncpa [#allocation3], 1
    %427 = vsyncpa [#allocation6], 1
    %428 = vsyncpa [#allocation4], 1

// kernel: tpu_custom_call.1
$region0: #{tpu_custom_call.1}
  #allocation0 [shape = 'u32[]', space=smem, size = 0x4, offset = 0x4, fixed_abs, tag = 'smem constant byte address 0x4 - core index']
  #allocation1 [shape = 'u32[144,128]{1,0:T(1,128)}', space=vmem, size = 0x12000, scoped, tag = 'internal scratch']
  %s0 = inlined_call_operand.hbm [shape: f32[16,128], index: 0, kind: input, shape index: {}]
  %s1 = inlined_call_operand.hbm [shape: f32[3,128,128], index: 1, kind: input, shape index: {}]
  %s2 = inlined_call_operand.vmem [shape: f32[3,1,128], index: 2, kind: input, shape index: {}]
  %s3 = inlined_call_operand.hbm [shape: f32[16,128], index: 3, kind: output, shape index: {}]
  %s4 = sld [smem:[#allocation0]]
  $region30: #{tpu_custom_call.1} parent=0
    _
  %s6 = ssub.s32 1, %s4
  %s7 = scalar_select 0, %s6, %s4
  $region1: #{tpu_custom_call.1} parent=0
    #allocation2 [shape = 'u8[8192]{0}', space=vmem, size = 0x2000, scoped, tag = 'input window, operand 0, single buffered']
    #allocation3 [shape = 's32[1]{0}', space=sflag, size = 0x4, scoped, tag = 'scoped memory for tpu_custom_call.1']
    #allocation4 [shape = 's32[1]{0}', space=sflag, size = 0x4, scoped, tag = 'scoped memory for tpu_custom_call.1']
    #allocation5 [shape = 'u8[196608]{0}', space=vmem, size = 0x30000, scoped, tag = 'input window, operand 1, single buffered']
    #allocation6 [shape = 's32[1]{0}', space=sflag, size = 0x4, scoped, tag = 'scoped memory for tpu_custom_call.1']
    #allocation7 [shape = 'u8[8192]{0}', space=vmem, size = 0x2000, scoped, tag = 'output window, operand 0, single buffered']
    %8 = vsyncpa [#allocation3], 0
    %9 = vsyncpa [#allocation6], 0
    %10 = vsyncpa [#allocation4], 0
    // Predicated region
    $region2: #{tpu_custom_call.1} parent=1 // pred_check
      _
    $region3: #{tpu_custom_call.1} parent=1 // pred_check_branch
      %12 = sbr.rel (0) target = $region5
    $region4: #{tpu_custom_call.1} parent=1 // pred_region
      %s14 = ssub.s32 256, 256
      %15 = vsyncadd [#allocation3], %s14
      %s16 = sshll.u32 [#allocation2], 4
      %s17 = int_to_ptr.vmem [resolvable:$true] %s16
      %22 = dma.hbm_to_vmem [thread:$0]  %s0, 256, %s17, [#allocation3], 128, 128, 8
    $region5: #{tpu_custom_call.1} parent=1 // pred_fallthru
      _
    // Predicated region
    $region6: #{tpu_custom_call.1} parent=1 // pred_check
      _
    $region7: #{tpu_custom_call.1} parent=1 // pred_check_branch
      %24 = sbr.rel (0) target = $region9
    $region8: #{tpu_custom_call.1} parent=1 // pred_region
      %s26 = ssub.s32 6144, 6144
      %27 = vsyncadd [#allocation6], %s26
      %s28 = sshll.u32 [#allocation5], 4
      %s29 = int_to_ptr.vmem [resolvable:$true] %s28
      %34 = dma.hbm_to_vmem [thread:$0]  %s1, 6144, %s29, [#allocation6], 128, 128, 8
    $region9: #{tpu_custom_call.1} parent=1 // pred_fallthru
      _
    // Predicated region
    $region10: #{tpu_custom_call.1} parent=1 // pred_check
      _
    $region11: #{tpu_custom_call.1} parent=1 // pred_check_branch
      %36 = sbr.rel (0) target = $region13
    $region12: #{tpu_custom_call.1} parent=1 // pred_region
      _
    $region13: #{tpu_custom_call.1} parent=1 // pred_fallthru
      _
    // Predicated region
    $region14: #{tpu_custom_call.1} parent=1 // pred_check
      _
    $region15: #{tpu_custom_call.1} parent=1 // pred_check_branch
      %38 = sbr.rel (0) target = $region17
    $region16: #{tpu_custom_call.1} parent=1 // pred_region
      %39 = dma.done [#allocation3], 256
    $region17: #{tpu_custom_call.1} parent=1 // pred_fallthru
      _
    // Predicated region
    $region18: #{tpu_custom_call.1} parent=1 // pred_check
      _
    $region19: #{tpu_custom_call.1} parent=1 // pred_check_branch
      %41 = sbr.rel (0) target = $region21
    $region20: #{tpu_custom_call.1} parent=1 // pred_region
      %42 = dma.done [#allocation6], 6144
    $region21: #{tpu_custom_call.1} parent=1 // pred_fallthru
      _
    %v43 = vld [vmem:[#allocation2] sm:$0xff]
    %v44 = vld [vmem:[#allocation2 + $0x8] sm:$0xff]
    %v45 = vld [vmem:[#allocation5] sm:$0xff]
    %v46 = vld [vmem:[#allocation5 + $0x8] sm:$0xff]
    %v47 = vld [vmem:[#allocation5 + $0x10] sm:$0xff]
    %v48 = vld [vmem:[#allocation5 + $0x18] sm:$0xff]
    %v49 = vld [vmem:[#allocation5 + $0x20] sm:$0xff]
    %v50 = vld [vmem:[#allocation5 + $0x28] sm:$0xff]
    %v51 = vld [vmem:[#allocation5 + $0x30] sm:$0xff]
    %v52 = vld [vmem:[#allocation5 + $0x38] sm:$0xff]
    %v53 = vld [vmem:[#allocation5 + $0x40] sm:$0xff]
    %v54 = vld [vmem:[#allocation5 + $0x48] sm:$0xff]
    %v55 = vld [vmem:[#allocation5 + $0x50] sm:$0xff]
    %v56 = vld [vmem:[#allocation5 + $0x58] sm:$0xff]
    %v57 = vld [vmem:[#allocation5 + $0x60] sm:$0xff]
    %v58 = vld [vmem:[#allocation5 + $0x68] sm:$0xff]
    %v59 = vld [vmem:[#allocation5 + $0x70] sm:$0xff]
    %v60 = vld [vmem:[#allocation5 + $0x78] sm:$0xff]
    %v61 = vld [vmem:[%s2] sm:$0x1]
    %v63 = vlaneseq
    %v64 = vshrl.u32 %v63, 7
    %v65 = vsub.s32 0, %v64
    %v66 = vrot.slane %v61, %v65
    %68 = vmatprep.subr.mxu0 0.0
    %69 = vmatpush1.msra.mxu0 %v60
    %70 = vmatprep.subr.mxu0 0.0
    %71 = vmatpush1.msra.mxu0 %v59
    %72 = vmatprep.subr.mxu0 0.0
    %73 = vmatpush1.msra.mxu0 %v58
    %74 = vmatprep.subr.mxu0 0.0
    %75 = vmatpush1.msra.mxu0 %v57
    %76 = vmatprep.subr.mxu0 0.0
    %77 = vmatpush1.msra.mxu0 %v56
    %78 = vmatprep.subr.mxu0 0.0
    %79 = vmatpush1.msra.mxu0 %v55
    %80 = vmatprep.subr.mxu0 0.0
    %81 = vmatpush1.msra.mxu0 %v54
    %82 = vmatprep.subr.mxu0 0.0
    %83 = vmatpush1.msra.mxu0 %v53
    %84 = vmatprep.subr.mxu0 0.0
    %85 = vmatpush1.msra.mxu0 %v52
    %86 = vmatprep.subr.mxu0 0.0
    %87 = vmatpush1.msra.mxu0 %v51
    %88 = vmatprep.subr.mxu0 0.0
    %89 = vmatpush1.msra.mxu0 %v50
    %90 = vmatprep.subr.mxu0 0.0
    %91 = vmatpush1.msra.mxu0 %v49
    %92 = vmatprep.subr.mxu0 0.0
    %93 = vmatpush1.msra.mxu0 %v48
    %94 = vmatprep.subr.mxu0 0.0
    %95 = vmatpush1.msra.mxu0 %v47
    %96 = vmatprep.subr.mxu0 0.0
    %97 = vmatpush1.msra.mxu0 %v46
    %98 = vmatprep.subr.mxu0 0.0
    %99 = vmatpush1.msra.mxu0 %v45
    %100 = vmatprep.subr.mxu0 0.0
    %101 = vmatpush2.msra.mxu0 0.0
    %102 = vmatprep.subr.mxu0 0.0
    %103 = vmatpush2.msra.mxu0 0.0
    %104 = vmatprep.subr.mxu0 0.0
    %105 = vmatpush2.msra.mxu0 0.0
    %106 = vmatprep.subr.mxu0 0.0
    %107 = vmatpush2.msra.mxu0 0.0
    %108 = vmatprep.subr.mxu0 0.0
    %109 = vmatpush2.msra.mxu0 0.0
    %110 = vmatprep.subr.mxu0 0.0
    %111 = vmatpush2.msra.mxu0 0.0
    %112 = vmatprep.subr.mxu0 0.0
    %113 = vmatpush2.msra.mxu0 0.0
    %114 = vmatprep.subr.mxu0 0.0
    %115 = vmatpush2.msra.mxu0 0.0
    %116 = vmatprep.subr.mxu0 0.0
    %117 = vmatpush2.msra.mxu0 0.0
    %118 = vmatprep.subr.mxu0 0.0
    %119 = vmatpush2.msra.mxu0 0.0
    %120 = vmatprep.subr.mxu0 0.0
    %121 = vmatpush2.msra.mxu0 0.0
    %122 = vmatprep.subr.mxu0 0.0
    %123 = vmatpush2.msra.mxu0 0.0
    %124 = vmatprep.subr.mxu0 0.0
    %125 = vmatpush2.msra.mxu0 0.0
    %126 = vmatprep.subr.mxu0 0.0
    %127 = vmatpush2.msra.mxu0 0.0
    %128 = vmatprep.subr.mxu0 0.0
    %129 = vmatpush2.msra.mxu0 0.0
    %130 = vmatprep.subr.mxu0 0.0
    %131 = vmatpush2.msra.mxu0 0.0
    %132 = vmatprep.mubr.f32.mxu0 0.0
    %133 = vmatmul.mubr.f32.gmra.mxu0 %v43
    %v134 = vpop.f32.mrf.mxu0
    %v135 = vadd.f32 %v66, %v134
    %v136 = vpop.f32.mrf.mxu0
    %137 = vmatprep.mubr.f32.mxu0 0.0
    %138 = vmatmul.mubr.f32.gmra.mxu0 %v44
    %v139 = vpop.f32.mrf.mxu0
    %v140 = vadd.f32 %v66, %v139
    %v141 = vpop.f32.mrf.mxu0
    %142 = vdwg.mxu0
    %v143 = vmin.f32 %v135, 20.0
    %v144 = vmin.f32 %v140, 20.0
    %v145 = vmul.f32 %v143, 1.442695
    %v146 = vpow.pop %v145
    %v147 = vmul.f32 %v144, 1.442695
    %v148 = vpow.pop %v147
    %v149 = vadd.f32 %v146, 2.0
    %v150 = vadd.f32 %v148, 2.0
    %v151 = vmul.f32 %v146, %v149
    %v152 = vmul.f32 %v148, %v150
    %vm153 = vcmp.gt.f32.partialorder %v135, 20.0
    %vm154 = vcmp.gt.f32.partialorder %v140, 20.0
    %v155 = vadd.f32 %v151, 2.0
    %v156 = vadd.f32 %v152, 2.0
    %v157 = vrcp.pop %v155
    %v158 = vmul.f32 %v151, %v157
    %v159 = vrcp.pop %v156
    %v160 = vmul.f32 %v152, %v159
    %v161 = vmul.f32 %v135, %v158
    %v162 = vmul.f32 %v140, %v160
    %v163 = vsel %vm153, %v135, %v161
    %v164 = vsel %vm154, %v140, %v162
    %s165 = scalar_lea.vmem [#allocation5], 128
    %v166 = vld [vmem:[%s165] sm:$0xff]
    %v167 = vld [vmem:[%s165 + $0x8] sm:$0xff]
    %v168 = vld [vmem:[%s165 + $0x10] sm:$0xff]
    %v169 = vld [vmem:[%s165 + $0x18] sm:$0xff]
    %v170 = vld [vmem:[%s165 + $0x20] sm:$0xff]
    %v171 = vld [vmem:[%s165 + $0x28] sm:$0xff]
    %v172 = vld [vmem:[%s165 + $0x30] sm:$0xff]
    %v173 = vld [vmem:[%s165 + $0x38] sm:$0xff]
    %v174 = vld [vmem:[%s165 + $0x40] sm:$0xff]
    %v175 = vld [vmem:[%s165 + $0x48] sm:$0xff]
    %v176 = vld [vmem:[%s165 + $0x50] sm:$0xff]
    %v177 = vld [vmem:[%s165 + $0x58] sm:$0xff]
    %v178 = vld [vmem:[%s165 + $0x60] sm:$0xff]
    %v179 = vld [vmem:[%s165 + $0x68] sm:$0xff]
    %v180 = vld [vmem:[%s165 + $0x70] sm:$0xff]
    %v181 = vld [vmem:[%s165 + $0x78] sm:$0xff]
    %s182 = scalar_lea.vmem %s2, 1
    %v183 = vld [vmem:[%s182] sm:$0x1]
    %v185 = vlaneseq
    %v186 = vshrl.u32 %v185, 7
    %v187 = vsub.s32 0, %v186
    %v188 = vrot.slane %v183, %v187
    %190 = vmatprep.subr.mxu0 0.0
    %191 = vmatpush1.msra.mxu0 %v181
    %192 = vmatprep.subr.mxu0 0.0
    %193 = vmatpush1.msra.mxu0 %v180
    %194 = vmatprep.subr.mxu0 0.0
    %195 = vmatpush1.msra.mxu0 %v179
    %196 = vmatprep.subr.mxu0 0.0
    %197 = vmatpush1.msra.mxu0 %v178
    %198 = vmatprep.subr.mxu0 0.0
    %199 = vmatpush1.msra.mxu0 %v177
    %200 = vmatprep.subr.mxu0 0.0
    %201 = vmatpush1.msra.mxu0 %v176
    %202 = vmatprep.subr.mxu0 0.0
    %203 = vmatpush1.msra.mxu0 %v175
    %204 = vmatprep.subr.mxu0 0.0
    %205 = vmatpush1.msra.mxu0 %v174
    %206 = vmatprep.subr.mxu0 0.0
    %207 = vmatpush1.msra.mxu0 %v173
    %208 = vmatprep.subr.mxu0 0.0
    %209 = vmatpush1.msra.mxu0 %v172
    %210 = vmatprep.subr.mxu0 0.0
    %211 = vmatpush1.msra.mxu0 %v171
    %212 = vmatprep.subr.mxu0 0.0
    %213 = vmatpush1.msra.mxu0 %v170
    %214 = vmatprep.subr.mxu0 0.0
    %215 = vmatpush1.msra.mxu0 %v169
    %216 = vmatprep.subr.mxu0 0.0
    %217 = vmatpush1.msra.mxu0 %v168
    %218 = vmatprep.subr.mxu0 0.0
    %219 = vmatpush1.msra.mxu0 %v167
    %220 = vmatprep.subr.mxu0 0.0
    %221 = vmatpush1.msra.mxu0 %v166
    %222 = vmatprep.subr.mxu0 0.0
    %223 = vmatpush2.msra.mxu0 0.0
    %224 = vmatprep.subr.mxu0 0.0
    %225 = vmatpush2.msra.mxu0 0.0
    %226 = vmatprep.subr.mxu0 0.0
    %227 = vmatpush2.msra.mxu0 0.0
    %228 = vmatprep.subr.mxu0 0.0
    %229 = vmatpush2.msra.mxu0 0.0
    %230 = vmatprep.subr.mxu0 0.0
    %231 = vmatpush2.msra.mxu0 0.0
    %232 = vmatprep.subr.mxu0 0.0
    %233 = vmatpush2.msra.mxu0 0.0
    %234 = vmatprep.subr.mxu0 0.0
    %235 = vmatpush2.msra.mxu0 0.0
    %236 = vmatprep.subr.mxu0 0.0
    %237 = vmatpush2.msra.mxu0 0.0
    %238 = vmatprep.subr.mxu0 0.0
    %239 = vmatpush2.msra.mxu0 0.0
    %240 = vmatprep.subr.mxu0 0.0
    %241 = vmatpush2.msra.mxu0 0.0
    %242 = vmatprep.subr.mxu0 0.0
    %243 = vmatpush2.msra.mxu0 0.0
    %244 = vmatprep.subr.mxu0 0.0
    %245 = vmatpush2.msra.mxu0 0.0
    %246 = vmatprep.subr.mxu0 0.0
    %247 = vmatpush2.msra.mxu0 0.0
    %248 = vmatprep.subr.mxu0 0.0
    %249 = vmatpush2.msra.mxu0 0.0
    %250 = vmatprep.subr.mxu0 0.0
    %251 = vmatpush2.msra.mxu0 0.0
    %252 = vmatprep.subr.mxu0 0.0
    %253 = vmatpush2.msra.mxu0 0.0
    %254 = vmatprep.mubr.f32.mxu0 0.0
    %255 = vmatmul.mubr.f32.gmra.mxu0 %v163
    %v256 = vpop.f32.mrf.mxu0
    %v257 = vadd.f32 %v188, %v256
    %v258 = vpop.f32.mrf.mxu0
    %259 = vmatprep.mubr.f32.mxu0 0.0
    %260 = vmatmul.mubr.f32.gmra.mxu0 %v164
    %v261 = vpop.f32.mrf.mxu0
    %v262 = vadd.f32 %v188, %v261
    %v263 = vpop.f32.mrf.mxu0
    %264 = vdwg.mxu0
    %v265 = vmin.f32 %v257, 20.0
    %v266 = vmin.f32 %v262, 20.0
    %v267 = vmul.f32 %v265, 1.442695
    %v268 = vpow.pop %v267
    %v269 = vmul.f32 %v266, 1.442695
    %v270 = vpow.pop %v269
    %v271 = vadd.f32 %v268, 2.0
    %v272 = vadd.f32 %v270, 2.0
    %v273 = vmul.f32 %v268, %v271
    %v274 = vmul.f32 %v270, %v272
    %vm275 = vcmp.gt.f32.partialorder %v257, 20.0
    %vm276 = vcmp.gt.f32.partialorder %v262, 20.0
    %v277 = vadd.f32 %v273, 2.0
    %v278 = vadd.f32 %v274, 2.0
    %v279 = vrcp.pop %v277
    %v280 = vmul.f32 %v273, %v279
    %v281 = vrcp.pop %v278
    %v282 = vmul.f32 %v274, %v281
    %v283 = vmul.f32 %v257, %v280
    %v284 = vmul.f32 %v262, %v282
    %v285 = vsel %vm275, %v257, %v283
    %v286 = vsel %vm276, %v262, %v284
    %s287 = scalar_lea.vmem [#allocation5], 256
    %v288 = vld [vmem:[%s287] sm:$0xff]
    %v289 = vld [vmem:[%s287 + $0x8] sm:$0xff]
    %v290 = vld [vmem:[%s287 + $0x10] sm:$0xff]
    %v291 = vld [vmem:[%s287 + $0x18] sm:$0xff]
    %v292 = vld [vmem:[%s287 + $0x20] sm:$0xff]
    %v293 = vld [vmem:[%s287 + $0x28] sm:$0xff]
    %v294 = vld [vmem:[%s287 + $0x30] sm:$0xff]
    %v295 = vld [vmem:[%s287 + $0x38] sm:$0xff]
    %v296 = vld [vmem:[%s287 + $0x40] sm:$0xff]
    %v297 = vld [vmem:[%s287 + $0x48] sm:$0xff]
    %v298 = vld [vmem:[%s287 + $0x50] sm:$0xff]
    %v299 = vld [vmem:[%s287 + $0x58] sm:$0xff]
    %v300 = vld [vmem:[%s287 + $0x60] sm:$0xff]
    %v301 = vld [vmem:[%s287 + $0x68] sm:$0xff]
    %v302 = vld [vmem:[%s287 + $0x70] sm:$0xff]
    %v303 = vld [vmem:[%s287 + $0x78] sm:$0xff]
    %s304 = scalar_lea.vmem %s2, 2
    %v305 = vld [vmem:[%s304] sm:$0x1]
    %v307 = vlaneseq
    %v308 = vshrl.u32 %v307, 7
    %v309 = vsub.s32 0, %v308
    %v310 = vrot.slane %v305, %v309
    %312 = vmatprep.subr.mxu0 0.0
    %313 = vmatpush1.msra.mxu0 %v303
    %314 = vmatprep.subr.mxu0 0.0
    %315 = vmatpush1.msra.mxu0 %v302
    %316 = vmatprep.subr.mxu0 0.0
    %317 = vmatpush1.msra.mxu0 %v301
    %318 = vmatprep.subr.mxu0 0.0
    %319 = vmatpush1.msra.mxu0 %v300
    %320 = vmatprep.subr.mxu0 0.0
    %321 = vmatpush1.msra.mxu0 %v299
    %322 = vmatprep.subr.mxu0 0.0
    %323 = vmatpush1.msra.mxu0 %v298
    %324 = vmatprep.subr.mxu0 0.0
    %325 = vmatpush1.msra.mxu0 %v297
    %326 = vmatprep.subr.mxu0 0.0
    %327 = vmatpush1.msra.mxu0 %v296
    %328 = vmatprep.subr.mxu0 0.0
    %329 = vmatpush1.msra.mxu0 %v295
    %330 = vmatprep.subr.mxu0 0.0
    %331 = vmatpush1.msra.mxu0 %v294
    %332 = vmatprep.subr.mxu0 0.0
    %333 = vmatpush1.msra.mxu0 %v293
    %334 = vmatprep.subr.mxu0 0.0
    %335 = vmatpush1.msra.mxu0 %v292
    %336 = vmatprep.subr.mxu0 0.0
    %337 = vmatpush1.msra.mxu0 %v291
    %338 = vmatprep.subr.mxu0 0.0
    %339 = vmatpush1.msra.mxu0 %v290
    %340 = vmatprep.subr.mxu0 0.0
    %341 = vmatpush1.msra.mxu0 %v289
    %342 = vmatprep.subr.mxu0 0.0
    %343 = vmatpush1.msra.mxu0 %v288
    %344 = vmatprep.subr.mxu0 0.0
    %345 = vmatpush2.msra.mxu0 0.0
    %346 = vmatprep.subr.mxu0 0.0
    %347 = vmatpush2.msra.mxu0 0.0
    %348 = vmatprep.subr.mxu0 0.0
    %349 = vmatpush2.msra.mxu0 0.0
    %350 = vmatprep.subr.mxu0 0.0
    %351 = vmatpush2.msra.mxu0 0.0
    %352 = vmatprep.subr.mxu0 0.0
    %353 = vmatpush2.msra.mxu0 0.0
    %354 = vmatprep.subr.mxu0 0.0
    %355 = vmatpush2.msra.mxu0 0.0
    %356 = vmatprep.subr.mxu0 0.0
    %357 = vmatpush2.msra.mxu0 0.0
    %358 = vmatprep.subr.mxu0 0.0
    %359 = vmatpush2.msra.mxu0 0.0
    %360 = vmatprep.subr.mxu0 0.0
    %361 = vmatpush2.msra.mxu0 0.0
    %362 = vmatprep.subr.mxu0 0.0
    %363 = vmatpush2.msra.mxu0 0.0
    %364 = vmatprep.subr.mxu0 0.0
    %365 = vmatpush2.msra.mxu0 0.0
    %366 = vmatprep.subr.mxu0 0.0
    %367 = vmatpush2.msra.mxu0 0.0
    %368 = vmatprep.subr.mxu0 0.0
    %369 = vmatpush2.msra.mxu0 0.0
    %370 = vmatprep.subr.mxu0 0.0
    %371 = vmatpush2.msra.mxu0 0.0
    %372 = vmatprep.subr.mxu0 0.0
    %373 = vmatpush2.msra.mxu0 0.0
    %374 = vmatprep.subr.mxu0 0.0
    %375 = vmatpush2.msra.mxu0 0.0
    %376 = vmatprep.mubr.f32.mxu0 0.0
    %377 = vmatmul.mubr.f32.gmra.mxu0 %v285
    %v378 = vpop.f32.mrf.mxu0
    %v379 = vadd.f32 %v310, %v378
    %v380 = vpop.f32.mrf.mxu0
    %381 = vmatprep.mubr.f32.mxu0 0.0
    %382 = vmatmul.mubr.f32.gmra.mxu0 %v286
    %v383 = vpop.f32.mrf.mxu0
    %v384 = vadd.f32 %v310, %v383
    %v385 = vpop.f32.mrf.mxu0
    %386 = vdwg.mxu0
    %v387 = vmin.f32 %v379, 20.0
    %v388 = vmin.f32 %v384, 20.0
    %v389 = vmul.f32 %v387, 1.442695
    %v390 = vpow.pop %v389
    %v391 = vmul.f32 %v388, 1.442695
    %v392 = vpow.pop %v391
    %v393 = vadd.f32 %v390, 2.0
    %v394 = vadd.f32 %v392, 2.0
    %v395 = vmul.f32 %v390, %v393
    %v396 = vmul.f32 %v392, %v394
    %vm397 = vcmp.gt.f32.partialorder %v379, 20.0
    %vm398 = vcmp.gt.f32.partialorder %v384, 20.0
    %v399 = vadd.f32 %v395, 2.0
    %v400 = vadd.f32 %v396, 2.0
    %v401 = vrcp.pop %v399
    %v402 = vmul.f32 %v395, %v401
    %v403 = vrcp.pop %v400
    %v404 = vmul.f32 %v396, %v403
    %v405 = vmul.f32 %v379, %v402
    %v406 = vmul.f32 %v384, %v404
    %v407 = vsel %vm397, %v379, %v405
    %v408 = vsel %vm398, %v384, %v406
    %409 = vst [vmem:[#allocation7] sm:$0xff] %v407
    %410 = vst [vmem:[#allocation7 + $0x8] sm:$0xff] %v408
    // Predicated region
    $region22: #{tpu_custom_call.1} parent=1 // pred_check
      _
    $region23: #{tpu_custom_call.1} parent=1 // pred_check_branch
      %412 = sbr.rel (0) target = $region25
    $region24: #{tpu_custom_call.1} parent=1 // pred_region
      %s414 = ssub.s32 256, 256
      %415 = vsyncadd [#allocation4], %s414
      %s416 = sshll.u32 [#allocation7], 4
      %s417 = int_to_ptr.vmem [resolvable:$true] %s416
      %422 = dma.vmem_to_hbm [thread:$0]  %s417, 256, %s3, [#allocation4], 128, 128, 8
    $region25: #{tpu_custom_call.1} parent=1 // pred_fallthru
      _
    // Predicated region
    $region26: #{tpu_custom_call.1} parent=1 // pred_check
      _
    $region27: #{tpu_custom_call.1} parent=1 // pred_check_branch
      %424 = sbr.rel (0) target = $region29
    $region28: #{tpu_custom_call.1} parent=1 // pred_region
      %425 = dma.done [#allocation4], 256
    $region29: #{tpu_custom_call.1} parent=1 // pred_fallthru
      _
    %426 = vsyncpa [#allocation3], 1
    %427 = vsyncpa [#allocation6], 1
    %428 = vsyncpa [#allocation4], 1

</llo_original>
